<compile_context>
chip_gen: v7x
topology: tpu7x:2x2x1
jax: 0.10.0
libtpu: 0.0.40
codegen_flags: <defaults>
</compile_context>

<pallas_src>
import jax
import jax.numpy as jnp
from jax import lax
from jax.experimental import pallas as pl
from jax.experimental.pallas import tpu as pltpu


def _make_repres_kernel(H, W, C, Ch_pad, pad0):
    """Fused RepRes forward for one batch element, channel-major layout."""
    HW = H * W

    def kernel(x_ref, w1_ref, b1_ref, w2_ref, b2_ref, w3_ref, b3_ref,
               out_ref, pad_ref):
        # ---- cv1: 1x1 conv (BN scale folded into weights) + bias + ReLU ----
        h1 = jnp.dot(w1_ref[...], x_ref[...].astype(jnp.bfloat16),
                     preferred_element_type=jnp.float32)
        h1 = jnp.maximum(h1 + b1_ref[...], 0.0)           # (Ch_pad, HW) f32

        # ---- in-VMEM zero padding of h1 (flat bf16 layout, aligned) --------
        # Only the borders are re-zeroed each step; the interior is fully
        # overwritten by the h1 store. pad0 is a lane-aligned multiple of 128
        # and > W, so the image store is tile-aligned and unmasked.
        border = jnp.zeros((Ch_pad, pad0), pad_ref.dtype)
        pad_ref[:, :pad0] = border
        pad_ref[:, pad0 + HW:pad0 + HW + pad0] = border
        pad_ref[:, pad0:pad0 + HW] = h1.astype(pad_ref.dtype)

        # ---- im2col patches for the RepConv 3x3 branch (bf16) --------------
        # TODO(synk): if profiling at production HW tiles shows the vext slot
        # (XLU lane rotates from the 8 misaligned tap slices) binding, switch
        # pad_ref to (Ch_pad, H_tile+2, W_pad) so dh=+-1 become aligned
        # second-minor slices and only the 3 dw shifts need lane rotates.
        col = lax.broadcasted_iota(jnp.int32, (1, HW), 1) % W
        not_left = col >= 1            # output column has a valid (w-1) tap
        not_right = col <= W - 2       # output column has a valid (w+1) tap
        taps = []
        for dh in (-1, 0, 1):
            for dw in (-1, 0, 1):
                s = pad0 + dh * W + dw
                t = pad_ref[:, s:s + HW]                  # (Ch_pad, HW) bf16
                if dw == -1:
                    t = jnp.where(not_left, t, 0)         # mask row-wrap
                elif dw == 1:
                    t = jnp.where(not_right, t, 0)
                taps.append(t.astype(jnp.bfloat16))
        # Each tap is Ch_pad (multiple of 16) bf16 sublanes -> the concat is
        # pure tile stacking; one K = 9*Ch_pad matmul covers both RepConv
        # branches (the 1x1 branch was folded into the center-tap columns).
        patches = jnp.concatenate(taps, axis=0)           # (9*Ch_pad, HW) bf16

        # ---- cv2 (RepConv): single reparameterized matmul + bias + ReLU ----
        h2 = jnp.dot(w2_ref[...], patches, preferred_element_type=jnp.float32)
        h2 = jnp.maximum(h2 + b2_ref[...], 0.0)           # (Ch_pad, HW) f32

        # ---- cv3: 1x1 conv + bias + ReLU, then the residual add ------------
        h3 = jnp.dot(w3_ref[...], h2.astype(jnp.bfloat16),
                     preferred_element_type=jnp.float32)
        h3 = jnp.maximum(h3 + b3_ref[...], 0.0)           # (C, HW) f32
        # Re-read x (VMEM-resident block) instead of pinning it across the
        # whole body; residual add in f32, store in the I/O dtype.
        out_ref[...] = (x_ref[...].astype(jnp.float32) + h3).astype(out_ref.dtype)

    return kernel


def repres_forward(x_nchw, params, eps=1e-5):
    """RepRes.forward: x + cv3(cv2(cv1(x))) as one fused Pallas TPU kernel."""
    N, C, H, W = x_nchw.shape
    Ch = params["cv1_w"].shape[0]                 # hidden channels
    Ch_pad = max(16, ((Ch + 15) // 16) * 16)      # bf16 sublane-tile aligned
    HW = H * W
    pad0 = ((W + 1 + 127) // 128) * 128           # aligned flat zero border
    assert pad0 > W                               # corner taps need >= W+1

    f32, bf16 = jnp.float32, jnp.bfloat16

    def fold(prefix):
        s = params[prefix + "_gamma"] / jnp.sqrt(params[prefix + "_var"] + eps)
        return s, params[prefix + "_beta"] - params[prefix + "_mean"] * s

    s1, c1 = fold("cv1")
    s2a, c2a = fold("cv2_c1")
    s2b, c2b = fold("cv2_c2")
    s3, c3 = fold("cv3")

    # cv1: (Ch, C, 1, 1) -> (Ch_pad, C), BN scale folded into the weights.
    w1m = jnp.zeros((Ch_pad, C), f32).at[:Ch].set(
        params["cv1_w"][:, :, 0, 0] * s1[:, None]).astype(bf16)
    b1v = jnp.zeros((Ch_pad, 1), f32).at[:Ch, 0].set(c1)

    # RepConv re-parameterization: 3x3 branch -> im2col matrix
    # (Ch_pad, 9*Ch_pad) with column order (tap = kh*3+kw, in-channel), then
    # the BN-folded 1x1 branch added into the center tap (kh=1, kw=1), which
    # exactly equals applying it to h1 (the center im2col tap is h1, unmasked).
    w2a = params["cv2_c1_w"] * s2a[:, None, None, None]            # (Ch,Ch,3,3)
    w2a = jnp.transpose(w2a, (0, 2, 3, 1))                          # (Ch,3,3,Ch)
    w2 = jnp.zeros((Ch_pad, 3, 3, Ch_pad), f32).at[:Ch, :, :, :Ch].set(w2a)
    w2b = params["cv2_c2_w"][:, :, 0, 0] * s2b[:, None]             # (Ch,Ch)
    w2 = w2.at[:Ch, 1, 1, :Ch].add(w2b)
    w2m = w2.reshape(Ch_pad, 9 * Ch_pad).astype(bf16)
    # Both RepConv branch biases act before the shared ReLU -> pre-sum them.
    b2v = jnp.zeros((Ch_pad, 1), f32).at[:Ch, 0].set(c2a + c2b)

    # cv3: (C, Ch, 1, 1) -> (C, Ch_pad).
    w3m = jnp.zeros((C, Ch_pad), f32).at[:, :Ch].set(
        params["cv3_w"][:, :, 0, 0] * s3[:, None]).astype(bf16)
    b3v = c3.reshape(C, 1).astype(f32)

    # Free, contiguous reshape of the NCHW input -> channel-major, lane-dense.
    # Dtype-preserving: pass bf16 activations for production HBM-bound shapes
    # to halve input/output DMA bytes (residual is still added in f32 inside).
    x_flat = x_nchw.reshape(N, C, HW)

    kernel = _make_repres_kernel(H, W, C, Ch_pad, pad0)
    out = pl.pallas_call(
        kernel,
        out_shape=jax.ShapeDtypeStruct((N, C, HW), x_flat.dtype),
        grid_spec=pltpu.PrefetchScalarGridSpec(
            num_scalar_prefetch=0,
            grid=(N,),
            in_specs=[
                pl.BlockSpec((None, C, HW), lambda n: (n, 0, 0)),
                pl.BlockSpec((Ch_pad, C), lambda n: (0, 0)),
                pl.BlockSpec((Ch_pad, 1), lambda n: (0, 0)),
                pl.BlockSpec((Ch_pad, 9 * Ch_pad), lambda n: (0, 0)),
                pl.BlockSpec((Ch_pad, 1), lambda n: (0, 0)),
                pl.BlockSpec((C, Ch_pad), lambda n: (0, 0)),
                pl.BlockSpec((C, 1), lambda n: (0, 0)),
            ],
            out_specs=pl.BlockSpec((None, C, HW), lambda n: (n, 0, 0)),
            scratch_shapes=[
                pltpu.VMEM((Ch_pad, pad0 + HW + pad0), jnp.bfloat16)],
        ),
        compiler_params=pltpu.CompilerParams(
            dimension_semantics=("parallel",)),
    )(x_flat, w1m, b1v, w2m, b2v, w3m, b3v)
    # TODO(synk): for production YOLO shapes (H,W >= 64, C >= 64) switch to a
    # grid over (N, H-tiles) — both axes "parallel" so N=1 inference still
    # gives >= 2 parallel steps for v7x's two TensorCores — with halo'd input
    # rows; size HW_tile against v7x's 64 MiB physical / 32 MiB scoped VMEM
    # (2x double-buffered C*HW_tile in+out, bf16 im2col patches, pad scratch,
    # weights; keep <= ~40-48 MiB) and set vmem_limit_bytes explicitly.
    return out.reshape(N, C, H, W)


def _reference_forward(x, params, eps=1e-5):
    """Pure-JAX f32 reference (lax.conv) to validate the Pallas kernel."""
    def bn(y, prefix):
        g = params[prefix + "_gamma"][None, :, None, None]
        b = params[prefix + "_beta"][None, :, None, None]
        m = params[prefix + "_mean"][None, :, None, None]
        v = params[prefix + "_var"][None, :, None, None]
        return (y - m) / jnp.sqrt(v + eps) * g + b

    def conv(y, w, pad):
        return lax.conv_general_dilated(
            y, w, window_strides=(1, 1), padding=((pad, pad), (pad, pad)),
            dimension_numbers=("NCHW", "OIHW", "NCHW"))

    h = jax.nn.relu(bn(conv(x, params["cv1_w"], 0), "cv1"))
    h = jax.nn.relu(bn(conv(h, params["cv2_c1_w"], 1), "cv2_c1")
                    + bn(conv(h, params["cv2_c2_w"], 0), "cv2_c2"))
    h = jax.nn.relu(bn(conv(h, params["cv3_w"], 0), "cv3"))
    return x + h


if __name__ == "__main__":
    # RepRes(in_channels=16, out_channels=16, ratio=0.25) -> h_channels = 4.
    N, C, H, W = 2, 16, 16, 16
    Ch = int(C * 0.25)

    key = jax.random.PRNGKey(0)
    ks = iter(jax.random.split(key, 32))

    def bn_params(prefix, ch):
        return {
            prefix + "_gamma": 1.0 + 0.1 * jax.random.normal(next(ks), (ch,), jnp.float32),
            prefix + "_beta": 0.1 * jax.random.normal(next(ks), (ch,), jnp.float32),
            prefix + "_mean": 0.05 * jax.random.normal(next(ks), (ch,), jnp.float32),
            prefix + "_var": 0.5 + jax.random.uniform(next(ks), (ch,), jnp.float32),
        }

    params = {
        # Conv weights in PyTorch (Cout, Cin, KH, KW) layout, bias=False.
        "cv1_w": 0.2 * jax.random.normal(next(ks), (Ch, C, 1, 1), jnp.float32),
        "cv2_c1_w": 0.2 * jax.random.normal(next(ks), (Ch, Ch, 3, 3), jnp.float32),
        "cv2_c2_w": 0.2 * jax.random.normal(next(ks), (Ch, Ch, 1, 1), jnp.float32),
        "cv3_w": 0.2 * jax.random.normal(next(ks), (C, Ch, 1, 1), jnp.float32),
    }
    params.update(bn_params("cv1", Ch))
    params.update(bn_params("cv2_c1", Ch))
    params.update(bn_params("cv2_c2", Ch))
    params.update(bn_params("cv3", C))

    x = jax.random.normal(next(ks), (N, C, H, W), dtype=jnp.float32)

    out = jax.block_until_ready(jax.jit(repres_forward)(x, params))
    ref = jax.block_until_ready(_reference_forward(x, params))

    assert out.shape == (N, C, H, W), out.shape
    err = float(jnp.max(jnp.abs(out - ref)))
    # bf16 MXU inputs / bf16 im2col activations with f32 accumulation -> allow
    # a small numerical tolerance vs. the all-f32 reference.
    assert err < 1e-1, err
    print("KERNEL_OK")
</pallas_src>

<mosaic_0001>
module attributes {stable_mosaic.version = 11 : i64} {
  func.func @kernel(%arg0: i32, %arg1: memref<1x16x256xf32, #tpu.memory_space<vmem>>, %arg2: memref<16x16xbf16, #tpu.memory_space<vmem>>, %arg3: memref<16x1xf32, #tpu.memory_space<vmem>>, %arg4: memref<16x144xbf16, #tpu.memory_space<vmem>>, %arg5: memref<16x1xf32, #tpu.memory_space<vmem>>, %arg6: memref<16x16xbf16, #tpu.memory_space<vmem>>, %arg7: memref<16x1xf32, #tpu.memory_space<vmem>>, %arg8: memref<1x16x256xf32, #tpu.memory_space<vmem>>, %arg9: memref<16x512xbf16, #tpu.memory_space<vmem>>) attributes {dimension_semantics = [#tpu.dimension_semantics<parallel>], iteration_bounds = array<i64: 2>, scalar_prefetch = 0 : i64, scratch_operands = 1 : i64, tpu.core_type = #tpu.core_type<tc>, window_params = [{transform_indices = @transform_0, window_bounds = array<i64: 1, 16, 256>}, {pipeline_mode = #tpu.pipeline_mode<synchronous>, transform_indices = @transform_1, window_bounds = array<i64: 16, 16>}, {pipeline_mode = #tpu.pipeline_mode<synchronous>, transform_indices = @transform_2, window_bounds = array<i64: 16, 1>}, {pipeline_mode = #tpu.pipeline_mode<synchronous>, transform_indices = @transform_3, window_bounds = array<i64: 16, 144>}, {pipeline_mode = #tpu.pipeline_mode<synchronous>, transform_indices = @transform_4, window_bounds = array<i64: 16, 1>}, {pipeline_mode = #tpu.pipeline_mode<synchronous>, transform_indices = @transform_5, window_bounds = array<i64: 16, 16>}, {pipeline_mode = #tpu.pipeline_mode<synchronous>, transform_indices = @transform_6, window_bounds = array<i64: 16, 1>}, {transform_indices = @transform_7, window_bounds = array<i64: 1, 16, 256>}]} {
    %c0 = arith.constant 0 : index
    %c0_0 = arith.constant 0 : index
    %0 = vector.load %arg2[%c0, %c0_0] : memref<16x16xbf16, #tpu.memory_space<vmem>>, vector<16x16xbf16>
    %c0_1 = arith.constant 0 : index
    %c0_2 = arith.constant 0 : index
    %c0_3 = arith.constant 0 : index
    %1 = vector.load %arg1[%c0_1, %c0_2, %c0_3] : memref<1x16x256xf32, #tpu.memory_space<vmem>>, vector<1x16x256xf32>
    %2 = vector.shape_cast %1 : vector<1x16x256xf32> to vector<16x256xf32>
    %3 = arith.truncf %2 : vector<16x256xf32> to vector<16x256xbf16>
    %cst = arith.constant dense<0.000000e+00> : vector<16x256xf32>
    %4 = tpu.matmul %0, %3, %cst {dimension_numbers = #tpu.dot_dimension_numbers<[1], [0], [0], [1], [0, 0, 1, 1], [], []>} : vector<16x16xbf16>, vector<16x256xbf16>, vector<16x256xf32> -> vector<16x256xf32>
    %c0_4 = arith.constant 0 : index
    %c0_5 = arith.constant 0 : index
    %5 = vector.load %arg3[%c0_4, %c0_5] : memref<16x1xf32, #tpu.memory_space<vmem>>, vector<16x1xf32>
    %6 = vector.broadcast %5 : vector<16x1xf32> to vector<16x256xf32>
    %7 = arith.addf %4, %6 : vector<16x256xf32>
    %cst_6 = arith.constant 0.000000e+00 : f32
    %8 = vector.broadcast %cst_6 : f32 to vector<16x256xf32>
    %9 = arith.maximumf %7, %8 : vector<16x256xf32>
    %cst_7 = arith.constant 0.000000e+00 : bf16
    %10 = vector.broadcast %cst_7 : bf16 to vector<16x128xbf16>
    %c0_8 = arith.constant 0 : index
    %c0_9 = arith.constant 0 : index
    %11 = vector.load %arg9[%c0_8, %c0_9] : memref<16x512xbf16, #tpu.memory_space<vmem>>, vector<16x128xbf16>
    tpu.vector_store %arg9[%c0_8, %c0_9], %10 {strides = array<i32>} : memref<16x512xbf16, #tpu.memory_space<vmem>>, vector<16x128xbf16>,
    %c0_10 = arith.constant 0 : index
    %c384 = arith.constant 384 : index
    %12 = vector.load %arg9[%c0_10, %c384] : memref<16x512xbf16, #tpu.memory_space<vmem>>, vector<16x128xbf16>
    tpu.vector_store %arg9[%c0_10, %c384], %10 {strides = array<i32>} : memref<16x512xbf16, #tpu.memory_space<vmem>>, vector<16x128xbf16>,
    %13 = arith.truncf %9 : vector<16x256xf32> to vector<16x256xbf16>
    %c0_11 = arith.constant 0 : index
    %c128 = arith.constant 128 : index
    %14 = vector.load %arg9[%c0_11, %c128] : memref<16x512xbf16, #tpu.memory_space<vmem>>, vector<16x256xbf16>
    tpu.vector_store %arg9[%c0_11, %c128], %13 {strides = array<i32>} : memref<16x512xbf16, #tpu.memory_space<vmem>>, vector<16x256xbf16>,
    %15 = tpu.iota {dimensions = array<i32: 1>} : vector<1x256xi32>
    %c16_i32 = arith.constant 16 : i32
    %c0_i32 = arith.constant 0 : i32
    %16 = arith.cmpi eq, %c16_i32, %c0_i32 : i32
    %c1_i32 = arith.constant 1 : i32
    %17 = arith.select %16, %c1_i32, %c16_i32 : i32
    %18 = vector.broadcast %17 : i32 to vector<1x256xi32>
    %19 = arith.remsi %15, %18 : vector<1x256xi32>
    %c0_i32_12 = arith.constant 0 : i32
    %20 = vector.broadcast %c0_i32_12 : i32 to vector<1x256xi32>
    %21 = arith.cmpi ne, %19, %20 : vector<1x256xi32>
    %c0_i32_13 = arith.constant 0 : i32
    %22 = vector.broadcast %c0_i32_13 : i32 to vector<1x256xi32>
    %23 = arith.cmpi slt, %19, %22 : vector<1x256xi32>
    %c0_i32_14 = arith.constant 0 : i32
    %24 = arith.cmpi slt, %17, %c0_i32_14 : i32
    %25 = vector.broadcast %24 : i1 to vector<1x256xi1>
    %26 = vector.broadcast %25 : vector<1x256xi1> to vector<1x256xi1>
    %27 = arith.xori %23, %26 : vector<1x256xi1>
    %28 = arith.andi %27, %21 : vector<1x256xi1>
    %29 = vector.broadcast %17 : i32 to vector<1x256xi32>
    %30 = arith.addi %19, %29 : vector<1x256xi32>
    %31 = arith.select %28, %30, %19 : vector<1x256xi1>, vector<1x256xi32>
    %c1_i32_15 = arith.constant 1 : i32
    %32 = vector.broadcast %c1_i32_15 : i32 to vector<1x256xi32>
    %33 = arith.cmpi sge, %31, %32 : vector<1x256xi32>
    %c14_i32 = arith.constant 14 : i32
    %34 = vector.broadcast %c14_i32 : i32 to vector<1x256xi32>
    %35 = arith.cmpi sle, %31, %34 : vector<1x256xi32>
    %c0_16 = arith.constant 0 : index
    %c111 = arith.constant 111 : index
    %36 = vector.load %arg9[%c0_16, %c111] : memref<16x512xbf16, #tpu.memory_space<vmem>>, vector<16x256xbf16>
    %c0_i32_17 = arith.constant 0 : i32
    %37 = arith.sitofp %c0_i32_17 : i32 to bf16
    %38 = vector.shape_cast %33 : vector<1x256xi1> to vector<1x256xi1>
    %39 = vector.broadcast %38 : vector<1x256xi1> to vector<16x256xi1>
    %40 = vector.broadcast %37 : bf16 to vector<16x256xbf16>
    %41 = arith.select %39, %36, %40 : vector<16x256xi1>, vector<16x256xbf16>
    %c0_18 = arith.constant 0 : index
    %c112 = arith.constant 112 : index
    %42 = vector.load %arg9[%c0_18, %c112] : memref<16x512xbf16, #tpu.memory_space<vmem>>, vector<16x256xbf16>
    %c0_19 = arith.constant 0 : index
    %c113 = arith.constant 113 : index
    %43 = vector.load %arg9[%c0_19, %c113] : memref<16x512xbf16, #tpu.memory_space<vmem>>, vector<16x256xbf16>
    %c0_i32_20 = arith.constant 0 : i32
    %44 = arith.sitofp %c0_i32_20 : i32 to bf16
    %45 = vector.shape_cast %35 : vector<1x256xi1> to vector<1x256xi1>
    %46 = vector.broadcast %45 : vector<1x256xi1> to vector<16x256xi1>
    %47 = vector.broadcast %44 : bf16 to vector<16x256xbf16>
    %48 = arith.select %46, %43, %47 : vector<16x256xi1>, vector<16x256xbf16>
    %c0_21 = arith.constant 0 : index
    %c127 = arith.constant 127 : index
    %49 = vector.load %arg9[%c0_21, %c127] : memref<16x512xbf16, #tpu.memory_space<vmem>>, vector<16x256xbf16>
    %c0_i32_22 = arith.constant 0 : i32
    %50 = arith.sitofp %c0_i32_22 : i32 to bf16
    %51 = vector.shape_cast %33 : vector<1x256xi1> to vector<1x256xi1>
    %52 = vector.broadcast %51 : vector<1x256xi1> to vector<16x256xi1>
    %53 = vector.broadcast %50 : bf16 to vector<16x256xbf16>
    %54 = arith.select %52, %49, %53 : vector<16x256xi1>, vector<16x256xbf16>
    %c0_23 = arith.constant 0 : index
    %c128_24 = arith.constant 128 : index
    %55 = vector.load %arg9[%c0_23, %c128_24] : memref<16x512xbf16, #tpu.memory_space<vmem>>, vector<16x256xbf16>
    %c0_25 = arith.constant 0 : index
    %c129 = arith.constant 129 : index
    %56 = vector.load %arg9[%c0_25, %c129] : memref<16x512xbf16, #tpu.memory_space<vmem>>, vector<16x256xbf16>
    %c0_i32_26 = arith.constant 0 : i32
    %57 = arith.sitofp %c0_i32_26 : i32 to bf16
    %58 = vector.shape_cast %35 : vector<1x256xi1> to vector<1x256xi1>
    %59 = vector.broadcast %58 : vector<1x256xi1> to vector<16x256xi1>
    %60 = vector.broadcast %57 : bf16 to vector<16x256xbf16>
    %61 = arith.select %59, %56, %60 : vector<16x256xi1>, vector<16x256xbf16>
    %c0_27 = arith.constant 0 : index
    %c143 = arith.constant 143 : index
    %62 = vector.load %arg9[%c0_27, %c143] : memref<16x512xbf16, #tpu.memory_space<vmem>>, vector<16x256xbf16>
    %c0_i32_28 = arith.constant 0 : i32
    %63 = arith.sitofp %c0_i32_28 : i32 to bf16
    %64 = vector.shape_cast %33 : vector<1x256xi1> to vector<1x256xi1>
    %65 = vector.broadcast %64 : vector<1x256xi1> to vector<16x256xi1>
    %66 = vector.broadcast %63 : bf16 to vector<16x256xbf16>
    %67 = arith.select %65, %62, %66 : vector<16x256xi1>, vector<16x256xbf16>
    %c0_29 = arith.constant 0 : index
    %c144 = arith.constant 144 : index
    %68 = vector.load %arg9[%c0_29, %c144] : memref<16x512xbf16, #tpu.memory_space<vmem>>, vector<16x256xbf16>
    %c0_30 = arith.constant 0 : index
    %c145 = arith.constant 145 : index
    %69 = vector.load %arg9[%c0_30, %c145] : memref<16x512xbf16, #tpu.memory_space<vmem>>, vector<16x256xbf16>
    %c0_i32_31 = arith.constant 0 : i32
    %70 = arith.sitofp %c0_i32_31 : i32 to bf16
    %71 = vector.shape_cast %35 : vector<1x256xi1> to vector<1x256xi1>
    %72 = vector.broadcast %71 : vector<1x256xi1> to vector<16x256xi1>
    %73 = vector.broadcast %70 : bf16 to vector<16x256xbf16>
    %74 = arith.select %72, %69, %73 : vector<16x256xi1>, vector<16x256xbf16>
    %75 = tpu.concatenate %41, %42, %48, %54, %55, %61, %67, %68, %74 in 0 : vector<16x256xbf16>, vector<16x256xbf16>, vector<16x256xbf16>, vector<16x256xbf16>, vector<16x256xbf16>, vector<16x256xbf16>, vector<16x256xbf16>, vector<16x256xbf16>, vector<16x256xbf16> -> vector<144x256xbf16>
    %c0_32 = arith.constant 0 : index
    %c0_33 = arith.constant 0 : index
    %76 = vector.load %arg4[%c0_32, %c0_33] : memref<16x144xbf16, #tpu.memory_space<vmem>>, vector<16x144xbf16>
    %cst_34 = arith.constant dense<0.000000e+00> : vector<16x256xf32>
    %77 = tpu.matmul %76, %75, %cst_34 {dimension_numbers = #tpu.dot_dimension_numbers<[1], [0], [0], [1], [0, 0, 1, 1], [], []>} : vector<16x144xbf16>, vector<144x256xbf16>, vector<16x256xf32> -> vector<16x256xf32>
    %c0_35 = arith.constant 0 : index
    %c0_36 = arith.constant 0 : index
    %78 = vector.load %arg5[%c0_35, %c0_36] : memref<16x1xf32, #tpu.memory_space<vmem>>, vector<16x1xf32>
    %79 = vector.broadcast %78 : vector<16x1xf32> to vector<16x256xf32>
    %80 = arith.addf %77, %79 : vector<16x256xf32>
    %cst_37 = arith.constant 0.000000e+00 : f32
    %81 = vector.broadcast %cst_37 : f32 to vector<16x256xf32>
    %82 = arith.maximumf %80, %81 : vector<16x256xf32>
    %c0_38 = arith.constant 0 : index
    %c0_39 = arith.constant 0 : index
    %83 = vector.load %arg6[%c0_38, %c0_39] : memref<16x16xbf16, #tpu.memory_space<vmem>>, vector<16x16xbf16>
    %84 = arith.truncf %82 : vector<16x256xf32> to vector<16x256xbf16>
    %cst_40 = arith.constant dense<0.000000e+00> : vector<16x256xf32>
    %85 = tpu.matmul %83, %84, %cst_40 {dimension_numbers = #tpu.dot_dimension_numbers<[1], [0], [0], [1], [0, 0, 1, 1], [], []>} : vector<16x16xbf16>, vector<16x256xbf16>, vector<16x256xf32> -> vector<16x256xf32>
    %c0_41 = arith.constant 0 : index
    %c0_42 = arith.constant 0 : index
    %86 = vector.load %arg7[%c0_41, %c0_42] : memref<16x1xf32, #tpu.memory_space<vmem>>, vector<16x1xf32>
    %87 = vector.broadcast %86 : vector<16x1xf32> to vector<16x256xf32>
    %88 = arith.addf %85, %87 : vector<16x256xf32>
    %cst_43 = arith.constant 0.000000e+00 : f32
    %89 = vector.broadcast %cst_43 : f32 to vector<16x256xf32>
    %90 = arith.maximumf %88, %89 : vector<16x256xf32>
    %c0_44 = arith.constant 0 : index
    %c0_45 = arith.constant 0 : index
    %c0_46 = arith.constant 0 : index
    %91 = vector.load %arg1[%c0_44, %c0_45, %c0_46] : memref<1x16x256xf32, #tpu.memory_space<vmem>>, vector<1x16x256xf32>
    %92 = vector.shape_cast %91 : vector<1x16x256xf32> to vector<16x256xf32>
    %93 = arith.addf %92, %90 : vector<16x256xf32>
    %c0_47 = arith.constant 0 : index
    %c0_48 = arith.constant 0 : index
    %c0_49 = arith.constant 0 : index
    %94 = vector.load %arg8[%c0_47, %c0_48, %c0_49] : memref<1x16x256xf32, #tpu.memory_space<vmem>>, vector<1x16x256xf32>
    %95 = vector.shape_cast %94 : vector<1x16x256xf32> to vector<16x256xf32>
    %96 = vector.shape_cast %93 : vector<16x256xf32> to vector<1x16x256xf32>
    tpu.vector_store %arg8[%c0_47, %c0_48, %c0_49], %96 {strides = array<i32>} : memref<1x16x256xf32, #tpu.memory_space<vmem>>, vector<1x16x256xf32>,
    return
  }
  func.func @transform_0(%arg0: i32) -> (i32, i32, i32) {
    %c0_i32 = arith.constant 0 : i32
    %c0_i32_0 = arith.constant 0 : i32
    %c0_i32_1 = arith.constant 0 : i32
    return %arg0, %c0_i32, %c0_i32_0 : i32, i32, i32
  }
  func.func @transform_1(%arg0: i32) -> (i32, i32) {
    %c0_i32 = arith.constant 0 : i32
    %c0_i32_0 = arith.constant 0 : i32
    %c0_i32_1 = arith.constant 0 : i32
    return %c0_i32, %c0_i32_0 : i32, i32
  }
  func.func @transform_2(%arg0: i32) -> (i32, i32) {
    %c0_i32 = arith.constant 0 : i32
    %c0_i32_0 = arith.constant 0 : i32
    %c0_i32_1 = arith.constant 0 : i32
    return %c0_i32, %c0_i32_0 : i32, i32
  }
  func.func @transform_3(%arg0: i32) -> (i32, i32) {
    %c0_i32 = arith.constant 0 : i32
    %c0_i32_0 = arith.constant 0 : i32
    %c0_i32_1 = arith.constant 0 : i32
    return %c0_i32, %c0_i32_0 : i32, i32
  }
  func.func @transform_4(%arg0: i32) -> (i32, i32) {
    %c0_i32 = arith.constant 0 : i32
    %c0_i32_0 = arith.constant 0 : i32
    %c0_i32_1 = arith.constant 0 : i32
    return %c0_i32, %c0_i32_0 : i32, i32
  }
  func.func @transform_5(%arg0: i32) -> (i32, i32) {
    %c0_i32 = arith.constant 0 : i32
    %c0_i32_0 = arith.constant 0 : i32
    %c0_i32_1 = arith.constant 0 : i32
    return %c0_i32, %c0_i32_0 : i32, i32
  }
  func.func @transform_6(%arg0: i32) -> (i32, i32) {
    %c0_i32 = arith.constant 0 : i32
    %c0_i32_0 = arith.constant 0 : i32
    %c0_i32_1 = arith.constant 0 : i32
    return %c0_i32, %c0_i32_0 : i32, i32
  }
  func.func @transform_7(%arg0: i32) -> (i32, i32, i32) {
    %c0_i32 = arith.constant 0 : i32
    %c0_i32_0 = arith.constant 0 : i32
    %c0_i32_1 = arith.constant 0 : i32
    return %arg0, %c0_i32, %c0_i32_0 : i32, i32, i32
  }
}

</mosaic_0001>

<llo_original>
// kernel: repres_forward.1
$region0: #{repres_forward.1}
  #allocation0 [shape = 'u32[]', space=smem, size = 0x4, offset = 0x4, fixed_abs, tag = 'smem constant byte address 0x4 - core index']
  #allocation1 [shape = 'u32[144,128]{1,0:T(1,128)}', space=vmem, size = 0x12000, scoped, tag = 'internal scratch']
  #allocation2 [shape = 'bf16[16,512]{1,0:T(16,128)(2,1)}', space=vmem, size = 0x4000, scoped, tag = 'scratch operand']
  %s0 = inlined_call_operand.vmem [shape: f32[2,16,256], index: 0, kind: input, shape index: {}]
  %s1 = inlined_call_operand.vmem [shape: bf16[16,16], index: 1, kind: input, shape index: {}]
  %s2 = inlined_call_operand.vmem [shape: f32[16,1], index: 2, kind: input, shape index: {}]
  %s3 = inlined_call_operand.vmem [shape: bf16[16,144], index: 3, kind: input, shape index: {}]
  %s4 = inlined_call_operand.vmem [shape: f32[16,1], index: 4, kind: input, shape index: {}]
  %s5 = inlined_call_operand.vmem [shape: bf16[16,16], index: 5, kind: input, shape index: {}]
  %s6 = inlined_call_operand.vmem [shape: f32[16,1], index: 6, kind: input, shape index: {}]
  %s7 = inlined_call_operand.vmem [shape: f32[2,16,256], index: 7, kind: output, shape index: {}]
  %s8 = sld [smem:[#allocation0]]
  $region61: #{repres_forward.1} parent=0
    _
  %s10 = ssub.s32 1, %s8
  %s11 = scalar_select 0, %s10, %s8
  loop: start=0, step=1, limit=4
  $region2: #{repres_forward.1} parent=0 // loop_pre_header
    _
  $region3: #{repres_forward.1} parent=0 // loop_header
    %s13 = sphi 0, %s17
    %p14 = scmp.ge.s32.totalorder %s13, 4
    %s23 = sphi 0, %s25
    %s26 = sphi 0, %s23
    %s27 = sphi 0, %s26
    %s43 = sphi 0, %s27
    %s47 = sphi 0, %s47
    %s49 = sphi 0, %s47
    %s50 = sphi 0, %s49
    %s64 = sphi 0, %s50
    %s68 = sphi 0, %s68
    %s70 = sphi 0, %s68
    %s71 = sphi 0, %s70
    %s85 = sphi 0, %s71
    %s89 = sphi 0, %s89
    %s91 = sphi 0, %s89
    %s92 = sphi 0, %s91
    %s106 = sphi 0, %s92
    %s110 = sphi 0, %s110
    %s112 = sphi 0, %s110
    %s113 = sphi 0, %s112
    %s127 = sphi 0, %s113
    %s131 = sphi 0, %s131
    %s133 = sphi 0, %s131
    %s134 = sphi 0, %s133
    %s148 = sphi 0, %s134
    %s152 = sphi 0, %s152
    %s154 = sphi 0, %s152
    %s155 = sphi 0, %s154
    %s169 = sphi 0, %s155
    %s175 = sphi 0, %s177
    %s178 = sphi 0, %s175
    %s179 = sphi 0, %s178
    %s195 = sphi 0, %s179
  $region4: #{repres_forward.1} parent=0 // loop_header_branch
    %16 = sbr.rel (%p14) target = $region8
  $region5: #{repres_forward.1} parent=0 // loop_body
    %s18 = ssub.s32 %s13, 1
    %s19 = ssub.s32 %s13, 2
    %s20 = sadd.s32 %s13, 1
    %s21 = ssub.s32 %s13, %s20
    %p22 = scmp.eq.s32.totalorder %s21, 0
    %s24 = sadd.s32 %s23, 1
    %s25 = scalar_select %p22, %s23, %s24
    %p28 = pneg %p22
    %p29 = scmp.eq.s32.totalorder %s13, 1
    %p30 = por %p28, %p29
    %p31 = scmp.ne.s32.totalorder %s23, %s26
    %p32 = scmp.eq.s32.totalorder %s13, 0
    %p33 = por %p31, %p32
    %p34 = scmp.ne.s32.totalorder %s23, %s26
    %p35 = scmp.eq.s32.totalorder %s18, 1
    %p36 = por %p34, %p35
    %p37 = scmp.ne.s32.totalorder %s26, %s27
    %p38 = scmp.eq.s32.totalorder %s18, 0
    %p39 = por %p37, %p38
    %p40 = scmp.ne.s32.totalorder %s26, %s27
    %p41 = scmp.eq.s32.totalorder %s19, 1
    %p42 = por %p40, %p41
    %p44 = scmp.ne.s32.totalorder %s27, %s43
    %p45 = scmp.eq.s32.totalorder %s19, 0
    %p46 = por %p44, %p45
    %s48 = sadd.s32 %s47, 1
    %p51 = scmp.eq.s32.totalorder %s13, 1
    %p52 = scmp.ne.s32.totalorder %s47, %s49
    %p53 = scmp.eq.s32.totalorder %s13, 0
    %p54 = por %p52, %p53
    %p55 = scmp.ne.s32.totalorder %s47, %s49
    %p56 = scmp.eq.s32.totalorder %s18, 1
    %p57 = por %p55, %p56
    %p58 = scmp.ne.s32.totalorder %s49, %s50
    %p59 = scmp.eq.s32.totalorder %s18, 0
    %p60 = por %p58, %p59
    %p61 = scmp.ne.s32.totalorder %s49, %s50
    %p62 = scmp.eq.s32.totalorder %s19, 1
    %p63 = por %p61, %p62
    %p65 = scmp.ne.s32.totalorder %s50, %s64
    %p66 = scmp.eq.s32.totalorder %s19, 0
    %p67 = por %p65, %p66
    %s69 = sadd.s32 %s68, 1
    %p72 = scmp.eq.s32.totalorder %s13, 1
    %p73 = scmp.ne.s32.totalorder %s68, %s70
    %p74 = scmp.eq.s32.totalorder %s13, 0
    %p75 = por %p73, %p74
    %p76 = scmp.ne.s32.totalorder %s68, %s70
    %p77 = scmp.eq.s32.totalorder %s18, 1
    %p78 = por %p76, %p77
    %p79 = scmp.ne.s32.totalorder %s70, %s71
    %p80 = scmp.eq.s32.totalorder %s18, 0
    %p81 = por %p79, %p80
    %p82 = scmp.ne.s32.totalorder %s70, %s71
    %p83 = scmp.eq.s32.totalorder %s19, 1
    %p84 = por %p82, %p83
    %p86 = scmp.ne.s32.totalorder %s71, %s85
    %p87 = scmp.eq.s32.totalorder %s19, 0
    %p88 = por %p86, %p87
    %s90 = sadd.s32 %s89, 1
    %p93 = scmp.eq.s32.totalorder %s13, 1
    %p94 = scmp.ne.s32.totalorder %s89, %s91
    %p95 = scmp.eq.s32.totalorder %s13, 0
    %p96 = por %p94, %p95
    %p97 = scmp.ne.s32.totalorder %s89, %s91
    %p98 = scmp.eq.s32.totalorder %s18, 1
    %p99 = por %p97, %p98
    %p100 = scmp.ne.s32.totalorder %s91, %s92
    %p101 = scmp.eq.s32.totalorder %s18, 0
    %p102 = por %p100, %p101
    %p103 = scmp.ne.s32.totalorder %s91, %s92
    %p104 = scmp.eq.s32.totalorder %s19, 1
    %p105 = por %p103, %p104
    %p107 = scmp.ne.s32.totalorder %s92, %s106
    %p108 = scmp.eq.s32.totalorder %s19, 0
    %p109 = por %p107, %p108
    %s111 = sadd.s32 %s110, 1
    %p114 = scmp.eq.s32.totalorder %s13, 1
    %p115 = scmp.ne.s32.totalorder %s110, %s112
    %p116 = scmp.eq.s32.totalorder %s13, 0
    %p117 = por %p115, %p116
    %p118 = scmp.ne.s32.totalorder %s110, %s112
    %p119 = scmp.eq.s32.totalorder %s18, 1
    %p120 = por %p118, %p119
    %p121 = scmp.ne.s32.totalorder %s112, %s113
    %p122 = scmp.eq.s32.totalorder %s18, 0
    %p123 = por %p121, %p122
    %p124 = scmp.ne.s32.totalorder %s112, %s113
    %p125 = scmp.eq.s32.totalorder %s19, 1
    %p126 = por %p124, %p125
    %p128 = scmp.ne.s32.totalorder %s113, %s127
    %p129 = scmp.eq.s32.totalorder %s19, 0
    %p130 = por %p128, %p129
    %s132 = sadd.s32 %s131, 1
    %p135 = scmp.eq.s32.totalorder %s13, 1
    %p136 = scmp.ne.s32.totalorder %s131, %s133
    %p137 = scmp.eq.s32.totalorder %s13, 0
    %p138 = por %p136, %p137
    %p139 = scmp.ne.s32.totalorder %s131, %s133
    %p140 = scmp.eq.s32.totalorder %s18, 1
    %p141 = por %p139, %p140
    %p142 = scmp.ne.s32.totalorder %s133, %s134
    %p143 = scmp.eq.s32.totalorder %s18, 0
    %p144 = por %p142, %p143
    %p145 = scmp.ne.s32.totalorder %s133, %s134
    %p146 = scmp.eq.s32.totalorder %s19, 1
    %p147 = por %p145, %p146
    %p149 = scmp.ne.s32.totalorder %s134, %s148
    %p150 = scmp.eq.s32.totalorder %s19, 0
    %p151 = por %p149, %p150
    %s153 = sadd.s32 %s152, 1
    %p156 = scmp.eq.s32.totalorder %s13, 1
    %p157 = scmp.ne.s32.totalorder %s152, %s154
    %p158 = scmp.eq.s32.totalorder %s13, 0
    %p159 = por %p157, %p158
    %p160 = scmp.ne.s32.totalorder %s152, %s154
    %p161 = scmp.eq.s32.totalorder %s18, 1
    %p162 = por %p160, %p161
    %p163 = scmp.ne.s32.totalorder %s154, %s155
    %p164 = scmp.eq.s32.totalorder %s18, 0
    %p165 = por %p163, %p164
    %p166 = scmp.ne.s32.totalorder %s154, %s155
    %p167 = scmp.eq.s32.totalorder %s19, 1
    %p168 = por %p166, %p167
    %p170 = scmp.ne.s32.totalorder %s155, %s169
    %p171 = scmp.eq.s32.totalorder %s19, 0
    %p172 = por %p170, %p171
    %s173 = ssub.s32 %s13, %s20
    %p174 = scmp.eq.s32.totalorder %s173, 0
    %s176 = sadd.s32 %s175, 1
    %s177 = scalar_select %p174, %s175, %s176
    %p180 = pneg %p174
    %p181 = scmp.eq.s32.totalorder %s13, 1
    %p182 = por %p180, %p181
    %p183 = scmp.ne.s32.totalorder %s175, %s178
    %p184 = scmp.eq.s32.totalorder %s13, 0
    %p185 = por %p183, %p184
    %p186 = scmp.ne.s32.totalorder %s175, %s178
    %p187 = scmp.eq.s32.totalorder %s18, 1
    %p188 = por %p186, %p187
    %p189 = scmp.ne.s32.totalorder %s178, %s179
    %p190 = scmp.eq.s32.totalorder %s18, 0
    %p191 = por %p189, %p190
    %p192 = scmp.ne.s32.totalorder %s178, %s179
    %p193 = scmp.eq.s32.totalorder %s19, 1
    %p194 = por %p192, %p193
    %p196 = scmp.ne.s32.totalorder %s179, %s195
    %p197 = scmp.eq.s32.totalorder %s19, 0
    %p198 = por %p196, %p197
    %p199 = scmp.le.s32.totalorder 1, %s13
    %p200 = scmp.lt.s32.totalorder %s13, 3
    %p201 = pnand %p199, %p200
    %p202 = pneg %p201
    // Predicated region
    $region9: #{repres_forward.1} parent=5 // pred_check
      _
    $region10: #{repres_forward.1} parent=5 // pred_check_branch
      %204 = sbr.rel (%p201) target = $region12
    $region11: #{repres_forward.1} parent=5 // pred_region
      %s205 = ssub.s32 %s13, 1
      // Predicated region
      $region13: #{repres_forward.1} parent=11 // pred_check
        %p206 = pneg %p60
      $region14: #{repres_forward.1} parent=11 // pred_check_branch
        %208 = sbr.rel (%p206) target = $region16
      $region15: #{repres_forward.1} parent=11 // pred_region
        _
      $region16: #{repres_forward.1} parent=11 // pred_fallthru
        _
      // Predicated region
      $region17: #{repres_forward.1} parent=11 // pred_check
        %p209 = pneg %p81
      $region18: #{repres_forward.1} parent=11 // pred_check_branch
        %211 = sbr.rel (%p209) target = $region20
      $region19: #{repres_forward.1} parent=11 // pred_region
        _
      $region20: #{repres_forward.1} parent=11 // pred_fallthru
        _
      // Predicated region
      $region21: #{repres_forward.1} parent=11 // pred_check
        %p212 = pneg %p102
      $region22: #{repres_forward.1} parent=11 // pred_check_branch
        %214 = sbr.rel (%p212) target = $region24
      $region23: #{repres_forward.1} parent=11 // pred_region
        _
      $region24: #{repres_forward.1} parent=11 // pred_fallthru
        _
      // Predicated region
      $region25: #{repres_forward.1} parent=11 // pred_check
        %p215 = pneg %p123
      $region26: #{repres_forward.1} parent=11 // pred_check_branch
        %217 = sbr.rel (%p215) target = $region28
      $region27: #{repres_forward.1} parent=11 // pred_region
        _
      $region28: #{repres_forward.1} parent=11 // pred_fallthru
        _
      // Predicated region
      $region29: #{repres_forward.1} parent=11 // pred_check
        %p218 = pneg %p144
      $region30: #{repres_forward.1} parent=11 // pred_check_branch
        %220 = sbr.rel (%p218) target = $region32
      $region31: #{repres_forward.1} parent=11 // pred_region
        _
      $region32: #{repres_forward.1} parent=11 // pred_fallthru
        _
      // Predicated region
      $region33: #{repres_forward.1} parent=11 // pred_check
        %p221 = pneg %p165
      $region34: #{repres_forward.1} parent=11 // pred_check_branch
        %223 = sbr.rel (%p221) target = $region36
      $region35: #{repres_forward.1} parent=11 // pred_region
        _
      $region36: #{repres_forward.1} parent=11 // pred_fallthru
        _
    $region12: #{repres_forward.1} parent=5 // pred_fallthru
      _
    %p224 = scmp.lt.s32.totalorder %s13, 2
    // Predicated region
    $region37: #{repres_forward.1} parent=5 // pred_check
      %p225 = pneg %p224
    $region38: #{repres_forward.1} parent=5 // pred_check_branch
      %227 = sbr.rel (%p225) target = $region40
    $region39: #{repres_forward.1} parent=5 // pred_region
      // Predicated region
      $region41: #{repres_forward.1} parent=39 // pred_check
        %p228 = pneg %p33
      $region42: #{repres_forward.1} parent=39 // pred_check_branch
        %230 = sbr.rel (%p228) target = $region44
      $region43: #{repres_forward.1} parent=39 // pred_region
        %p231 = scmp.lt.s32.totalorder %s13, 1
        %s232 = scalar_select %p231, %s13, 1
        %s233 = smul.addr %s232, 4
        %s234 = smul.addr %s233, 8
        %s235 = scalar_lea.vmem %s0, %s234
      $region44: #{repres_forward.1} parent=39 // pred_fallthru
        _
    $region40: #{repres_forward.1} parent=5 // pred_fallthru
      _
    %p236 = scmp.le.s32.totalorder 1, %s13
    %p237 = scmp.lt.s32.totalorder %s13, 3
    %p238 = pnand %p236, %p237
    %p239 = pneg %p238
    // Predicated region
    $region45: #{repres_forward.1} parent=5 // pred_check
      _
    $region46: #{repres_forward.1} parent=5 // pred_check_branch
      %241 = sbr.rel (%p238) target = $region48
    $region47: #{repres_forward.1} parent=5 // pred_region
      %s242 = ssub.s32 %s13, 1
      %p243 = scmp.lt.s32.totalorder %s18, 1
      %s244 = scalar_select %p243, %s18, 1
      %s245 = smul.addr %s244, 4
      %s246 = smul.addr %s245, 8
      %s247 = scalar_lea.vmem %s0, %s246
      %p248 = pneg %p39
      %p249 = pneg %p36
      %p250 = pneg %p60
      %p251 = pneg %p57
      %p252 = pneg %p81
      %p253 = pneg %p78
      %p254 = pneg %p102
      %p255 = pneg %p99
      %p256 = pneg %p123
      %p257 = pneg %p120
      %p258 = pneg %p144
      %p259 = pneg %p141
      %p260 = pneg %p165
      %p261 = pneg %p162
      %p262 = pneg %p191
      %p263 = pneg %p188
      %p264 = scmp.lt.s32.totalorder %s18, 1
      %s265 = scalar_select %p264, %s18, 1
      %s266 = smul.addr %s265, 4
      %s267 = smul.addr %s266, 8
      %s268 = scalar_lea.vmem %s7, %s267
      %p269 = scmp.lt.s32.totalorder %s18, 1
      %s270 = scalar_select %p269, %s18, 1
      %s271 = smul.addr %s270, 4
      %s272 = smul.addr %s271, 8
      %s273 = scalar_lea.vmem %s0, %s272
      %p274 = scmp.lt.s32.totalorder %s18, 1
      %s275 = scalar_select %p274, %s18, 1
      %s276 = smul.addr %s275, 4
      %s277 = smul.addr %s276, 8
      %s278 = scalar_lea.vmem %s7, %s277
      %v282 = vld [vmem:[%s1] sm:$0xf]
      %v283 = vld [vmem:[%s1 + $0x4] sm:$0xf]
      %v284 = vld [vmem:[%s273] sm:$0xff]
      %v285 = vld [vmem:[%s273 + $0x8] sm:$0xff]
      %v286 = vld [vmem:[%s273 + $0x10] sm:$0xff]
      %v287 = vld [vmem:[%s273 + $0x18] sm:$0xff]
      %v288 = vpack.c.bf16 %v286, %v284
      %v289 = vpack.c.bf16 %v287, %v285
      %v290 = vld [vmem:[%s2] sm:$0xff]
      %v291 = vld [vmem:[%s2 + $0x8] sm:$0xff]
      %293 = vset.pattern.permute.xlu0 0
      %294 = vperm.xlu0 %293, %v290
      %v295 = vpop.permute.xlu0 %294
      %298 = vset.pattern.permute.xlu0 0
      %299 = vperm.xlu0 %298, %v291
      %v300 = vpop.permute.xlu0 %299
      %v304 = vunpack.c.l.b16 %v282
      %v305 = vunpack.c.l.b16 %v283
      %v306 = vpack.c.b16 %v305, %v304
      %vm307 = vcmask 130048
      %v309 = vsel %vm307, %v306, 0
      %311 = vmatprep.subr.bf16.mxu0 %v289
      %312 = vmatpush1.bf16.msra.mxu0 %v288
      %313 = vmatprep.subr.bf16.mxu0 0
      %314 = vmatpush1.bf16.msra.mxu0 0
      %315 = vmatprep.subr.bf16.mxu0 0
      %316 = vmatpush1.bf16.msra.mxu0 0
      %317 = vmatprep.subr.bf16.mxu0 0
      %318 = vmatpush1.bf16.msra.mxu0 0
      %319 = vmatprep.subr.bf16.mxu0 0
      %320 = vmatpush1.bf16.msra.mxu0 0
      %321 = vmatprep.subr.bf16.mxu0 0
      %322 = vmatpush1.bf16.msra.mxu0 0
      %323 = vmatprep.subr.bf16.mxu0 0
      %324 = vmatpush1.bf16.msra.mxu0 0
      %325 = vmatprep.subr.bf16.mxu0 0
      %326 = vmatpush1.bf16.msra.mxu0 0
      %327 = vmatprep.subr.bf16.mxu0 0
      %328 = vmatpush1.bf16.msra.mxu0 0
      %329 = vmatprep.subr.bf16.mxu0 0
      %330 = vmatpush1.bf16.msra.mxu0 0
      %331 = vmatprep.subr.bf16.mxu0 0
      %332 = vmatpush1.bf16.msra.mxu0 0
      %333 = vmatprep.subr.bf16.mxu0 0
      %334 = vmatpush1.bf16.msra.mxu0 0
      %335 = vmatprep.subr.bf16.mxu0 0
      %336 = vmatpush1.bf16.msra.mxu0 0
      %337 = vmatprep.subr.bf16.mxu0 0
      %338 = vmatpush1.bf16.msra.mxu0 0
      %339 = vmatprep.subr.bf16.mxu0 0
      %340 = vmatpush1.bf16.msra.mxu0 0
      %341 = vmatprep.subr.bf16.mxu0 0
      %342 = vmatpush1.bf16.msra.mxu0 0
      %343 = vmatprep.mubr.bf16.mxu0 0
      %344 = vmatmul.mubr.bf16.gmra.mrb[0].mxu0 %v309
      %v345 = vpop.f32.mrb[0].mxu0
      %v346 = vadd.f32 %v295, %v345
      %v347 = vpop.f32.mrb[0].mxu0
      %v348 = vadd.f32 %v295, %v347
      %v349 = vpop.f32.mrb[0].mxu0
      %v350 = vadd.f32 %v300, %v349
      %v351 = vpop.f32.mrb[0].mxu0
      %v352 = vadd.f32 %v300, %v351
      %353 = vdwg.mxu0
      %v354 = vmax.f32 %v346, 0.0
      %v355 = vmax.f32 %v348, 0.0
      %v356 = vmax.f32 %v350, 0.0
      %v357 = vmax.f32 %v352, 0.0
      %358 = vst [vmem:[#allocation2] sm:$0xff] 0
      %359 = vst [vmem:[#allocation2 + $0x18] sm:$0xff] 0
      %v360 = vpack.c.bf16 %v356, %v354
      %v361 = vpack.c.bf16 %v357, %v355
      %362 = vst [vmem:[#allocation2 + $0x8] sm:$0xff] %v360
      %363 = vst [vmem:[#allocation2 + $0x10] sm:$0xff] %v361
      %v364 = vlaneseq
      %v365 = vand.u32 %v364, 127
      %v366 = vadd.s32 %v365, 128
      %vm367 = vcmp.lt.s32.totalorder %v365, 0
      %v368 = vsub.s32 0, %v365
      %v369 = vsel %vm367, %v368, %v365
      %v370 = vshrl.u32 %v369, 4
      %v371 = vand.u32 %v369, 15
      %v372 = vsub.s32 0, %v371
      %v373 = vsel %vm367, %v372, %v371
      %vm374 = vcmp.lt.s32.totalorder %v366, 0
      %v375 = vsub.s32 0, %v366
      %v376 = vsel %vm374, %v375, %v366
      %v377 = vshrl.u32 %v376, 4
      %v378 = vand.u32 %v376, 15
      %v379 = vsub.s32 0, %v378
      %v380 = vsel %vm374, %v379, %v378
      %vm381 = vcmp.ne.s32.totalorder %v373, 0
      %vm382 = vcmp.ne.s32.totalorder %v380, 0
      %vm383 = vcmp.lt.s32.totalorder %v373, 0
      %vm384 = vcmp.lt.s32.totalorder %v380, 0
      %vm385 = vmand %vm383, %vm381
      %vm386 = vmand %vm384, %vm382
      %v387 = vadd.s32 %v373, 16
      %v388 = vadd.s32 %v380, 16
      %v389 = vsel %vm385, %v387, %v373
      %v390 = vsel %vm386, %v388, %v380
      %vm391 = vcmp.ge.s32.totalorder %v389, 1
      %vm392 = vcmp.ge.s32.totalorder %v390, 1
      %vm393 = vcmp.le.s32.totalorder %v389, 14
      %vm394 = vcmp.le.s32.totalorder %v390, 14
      %v395 = vld [vmem:[#allocation2] sm:$0xff]
      %v396 = vld [vmem:[#allocation2 + $0x8] sm:$0xff]
      %v397 = vld [vmem:[#allocation2 + $0x10] sm:$0xff]
      %v398 = vsel %vm391, 1, 0
      %v399 = vsel %vm392, 1, 0
      %vm400 = vcmp.eq.s32.totalorder %v398, 1
      %vm401 = vcmp.eq.s32.totalorder %v399, 1
      %vm402 = vmpackc.low %vm401, %vm400
      %v403 = vsel %vm402, 65537, 0
      %v404 = vlaneseq
      %v405 = vshrl.u32 %v404, 7
      %v406 = vsub.s32 0, %v405
      %v407 = vrot.slane %v403, %v406
      %v408 = vlaneseq
      %v409 = vshrl.u32 %v408, 7
      %v410 = vsub.s32 4, %v409
      %v411 = vrot.slane %v403, %v410
      %412 = vrot.lane.b32.xlu0 %v407, 111
      %v413 = vpop.permute.xlu0 %412
      %414 = vrot.lane.b32.xlu0 %v411, 111
      %v415 = vpop.permute.xlu0 %414
      %vm416 = vcmask 908288
      %v417 = vsel %vm416, %v413, %v415
      %vm418 = vcmp.ne.s16.totalorder %v413, 0
      %vm419 = vcmp.ne.s16.totalorder %v417, 0
      %vm420 = vcmp.ne.s16.totalorder %v415, 0
      %v421 = vsel %vm418, %v395, 0
      %v422 = vsel %vm419, %v396, 0
      %v423 = vsel %vm420, %v397, 0
      %v424 = vsel %vm393, 1, 0
      %v425 = vsel %vm394, 1, 0
      %vm426 = vcmp.eq.s32.totalorder %v424, 1
      %vm427 = vcmp.eq.s32.totalorder %v425, 1
      %vm428 = vmpackc.low %vm427, %vm426
      %v429 = vsel %vm428, 65537, 0
      %v430 = vlaneseq
      %v431 = vshrl.u32 %v430, 7
      %v432 = vsub.s32 0, %v431
      %v433 = vrot.slane %v429, %v432
      %v434 = vlaneseq
      %v435 = vshrl.u32 %v434, 7
      %v436 = vsub.s32 4, %v435
      %v437 = vrot.slane %v429, %v436
      %438 = vrot.lane.b32.xlu0 %v433, 113
      %v439 = vpop.permute.xlu0 %438
      %440 = vrot.lane.b32.xlu0 %v437, 113
      %v441 = vpop.permute.xlu0 %440
      %vm442 = vcmask 924672
      %v443 = vsel %vm442, %v439, %v441
      %vm444 = vcmp.ne.s16.totalorder %v439, 0
      %vm445 = vcmp.ne.s16.totalorder %v443, 0
      %vm446 = vcmp.ne.s16.totalorder %v441, 0
      %v447 = vsel %vm444, %v395, 0
      %v448 = vsel %vm445, %v396, 0
      %v449 = vsel %vm446, %v397, 0
      %450 = vrot.lane.b32.xlu0 %v407, 127
      %v451 = vpop.permute.xlu0 %450
      %452 = vrot.lane.b32.xlu0 %v411, 127
      %v453 = vpop.permute.xlu0 %452
      %vm454 = vcmask 1039360
      %v455 = vsel %vm454, %v451, %v453
      %vm456 = vcmp.ne.s16.totalorder %v451, 0
      %vm457 = vcmp.ne.s16.totalorder %v455, 0
      %vm458 = vcmp.ne.s16.totalorder %v453, 0
      %v459 = vsel %vm456, %v395, 0
      %v460 = vsel %vm457, %v396, 0
      %v461 = vsel %vm458, %v397, 0
      %v462 = vld [vmem:[#allocation2 + $0x8] sm:$0xff]
      %v463 = vld [vmem:[#allocation2 + $0x10] sm:$0xff]
      %v464 = vld [vmem:[#allocation2 + $0x18] sm:$0xff]
      %465 = vrot.lane.b32.xlu0 %v433, 1
      %v466 = vpop.permute.xlu0 %465
      %467 = vrot.lane.b32.xlu0 %v437, 1
      %v468 = vpop.permute.xlu0 %467
      %vm469 = vcmask 7168
      %v470 = vsel %vm469, %v466, %v468
      %vm471 = vcmp.ne.s16.totalorder %v466, 0
      %vm472 = vcmp.ne.s16.totalorder %v470, 0
      %vm473 = vcmp.ne.s16.totalorder %v468, 0
      %v474 = vsel %vm471, %v462, 0
      %v475 = vsel %vm472, %v463, 0
      %v476 = vsel %vm473, %v464, 0
      %477 = vrot.lane.b32.xlu0 %v407, 15
      %v478 = vpop.permute.xlu0 %477
      %479 = vrot.lane.b32.xlu0 %v411, 15
      %v480 = vpop.permute.xlu0 %479
      %vm481 = vcmask 121856
      %v482 = vsel %vm481, %v478, %v480
      %vm483 = vcmp.ne.s16.totalorder %v478, 0
      %vm484 = vcmp.ne.s16.totalorder %v482, 0
      %vm485 = vcmp.ne.s16.totalorder %v480, 0
      %v486 = vsel %vm483, %v462, 0
      %v487 = vsel %vm484, %v463, 0
      %v488 = vsel %vm485, %v464, 0
      %489 = vrot.lane.b32.xlu0 %v433, 17
      %v490 = vpop.permute.xlu0 %489
      %491 = vrot.lane.b32.xlu0 %v437, 17
      %v492 = vpop.permute.xlu0 %491
      %vm493 = vcmask 138240
      %v494 = vsel %vm493, %v490, %v492
      %vm495 = vcmp.ne.s16.totalorder %v490, 0
      %vm496 = vcmp.ne.s16.totalorder %v494, 0
      %vm497 = vcmp.ne.s16.totalorder %v492, 0
      %v498 = vsel %vm495, %v462, 0
      %v499 = vsel %vm496, %v463, 0
      %v500 = vsel %vm497, %v464, 0
      %504 = vrot.lane.b32.xlu0 %v395, 127
      %v505 = vpop.permute.xlu0 %504
      %506 = vrot.lane.b32.xlu0 %v396, 127
      %v507 = vpop.permute.xlu0 %506
      %508 = vrot.lane.b32.xlu0 %v397, 127
      %v509 = vpop.permute.xlu0 %508
      %v510 = vsel %vm454, %v505, %v507
      %v511 = vsel %vm454, %v507, %v509
      %515 = vrot.lane.b32.xlu0 %v447, 126
      %v516 = vpop.permute.xlu0 %515
      %517 = vrot.lane.b32.xlu0 %v448, 126
      %v518 = vpop.permute.xlu0 %517
      %519 = vrot.lane.b32.xlu0 %v449, 126
      %v520 = vpop.permute.xlu0 %519
      %vm521 = vcmask 1031168
      %v522 = vsel %vm521, %v516, %v518
      %v523 = vsel %vm521, %v518, %v520
      %527 = vrot.lane.b32.xlu0 %v459, 112
      %v528 = vpop.permute.xlu0 %527
      %529 = vrot.lane.b32.xlu0 %v460, 112
      %v530 = vpop.permute.xlu0 %529
      %531 = vrot.lane.b32.xlu0 %v461, 112
      %v532 = vpop.permute.xlu0 %531
      %vm533 = vcmask 916480
      %v534 = vsel %vm533, %v528, %v530
      %v535 = vsel %vm533, %v530, %v532
      %536 = vrot.lane.b32.xlu0 %v396, 111
      %v537 = vpop.permute.xlu0 %536
      %538 = vrot.lane.b32.xlu0 %v397, 111
      %v539 = vpop.permute.xlu0 %538
      %v540 = vsel %vm416, %v537, %v539
      %544 = vrot.lane.b32.xlu0 %v474, 110
      %v545 = vpop.permute.xlu0 %544
      %546 = vrot.lane.b32.xlu0 %v475, 110
      %v547 = vpop.permute.xlu0 %546
      %548 = vrot.lane.b32.xlu0 %v476, 110
      %v549 = vpop.permute.xlu0 %548
      %vm550 = vcmask 900096
      %v551 = vsel %vm550, %v545, %v547
      %v552 = vsel %vm550, %v547, %v549
      %556 = vrot.lane.b32.xlu0 %v486, 96
      %v557 = vpop.permute.xlu0 %556
      %558 = vrot.lane.b32.xlu0 %v487, 96
      %v559 = vpop.permute.xlu0 %558
      %560 = vrot.lane.b32.xlu0 %v488, 96
      %v561 = vpop.permute.xlu0 %560
      %vm562 = vcmask 785408
      %v563 = vsel %vm562, %v557, %v559
      %v564 = vsel %vm562, %v559, %v561
      %568 = vrot.lane.b32.xlu0 %v462, 95
      %v569 = vpop.permute.xlu0 %568
      %570 = vrot.lane.b32.xlu0 %v463, 95
      %v571 = vpop.permute.xlu0 %570
      %572 = vrot.lane.b32.xlu0 %v464, 95
      %v573 = vpop.permute.xlu0 %572
      %vm574 = vcmask 777216
      %v575 = vsel %vm574, %v569, %v571
      %v576 = vsel %vm574, %v571, %v573
      %580 = vrot.lane.b32.xlu0 %v498, 94
      %v581 = vpop.permute.xlu0 %580
      %582 = vrot.lane.b32.xlu0 %v499, 94
      %v583 = vpop.permute.xlu0 %582
      %584 = vrot.lane.b32.xlu0 %v500, 94
      %v585 = vpop.permute.xlu0 %584
      %vm586 = vcmask 769024
      %v587 = vsel %vm586, %v581, %v583
      %v588 = vsel %vm586, %v583, %v585
      %v589 = vld [vmem:[%s3] sm:$0xff]
      %v590 = vld [vmem:[%s3 + $0x8] sm:$0xff]
      %v591 = vld [vmem:[%s4] sm:$0xff]
      %v592 = vld [vmem:[%s4 + $0x8] sm:$0xff]
      %594 = vset.pattern.permute.xlu0 0
      %595 = vperm.xlu0 %594, %v591
      %v596 = vpop.permute.xlu0 %595
      %599 = vset.pattern.permute.xlu0 0
      %600 = vperm.xlu0 %599, %v592
      %v601 = vpop.permute.xlu0 %600
      %v605 = vunpack.c.l.b16 %v589
      %v606 = vunpack.c.h.b16 %v589
      %v607 = vunpack.c.l.b16 %v590
      %v608 = vunpack.c.h.b16 %v590
      %v609 = vpack.c.b16 %v607, %v605
      %v610 = vpack.c.b16 %v608, %v606
      %615 = vrot.lane.b32.xlu0 %v421, 17
      %v616 = vpop.permute.xlu0 %615
      %617 = vrot.lane.b32.xlu0 %v422, 17
      %v618 = vpop.permute.xlu0 %617
      %619 = vrot.lane.b32.xlu0 %v423, 17
      %v620 = vpop.permute.xlu0 %619
      %621 = vrot.lane.b32.xlu0 %v510, 17
      %v622 = vpop.permute.xlu0 %621
      %623 = vrot.lane.b32.xlu0 %v511, 17
      %v624 = vpop.permute.xlu0 %623
      %625 = vrot.lane.b32.xlu0 %v509, 17
      %v626 = vpop.permute.xlu0 %625
      %627 = vrot.lane.b32.xlu0 %v522, 17
      %v628 = vpop.permute.xlu0 %627
      %629 = vrot.lane.b32.xlu0 %v523, 17
      %v630 = vpop.permute.xlu0 %629
      %631 = vrot.lane.b32.xlu0 %v520, 17
      %v632 = vpop.permute.xlu0 %631
      %633 = vrot.lane.b32.xlu0 %v534, 17
      %v634 = vpop.permute.xlu0 %633
      %635 = vrot.lane.b32.xlu0 %v535, 17
      %v636 = vpop.permute.xlu0 %635
      %637 = vrot.lane.b32.xlu0 %v532, 17
      %v638 = vpop.permute.xlu0 %637
      %639 = vrot.lane.b32.xlu0 %v537, 17
      %v640 = vpop.permute.xlu0 %639
      %641 = vrot.lane.b32.xlu0 %v540, 17
      %v642 = vpop.permute.xlu0 %641
      %643 = vrot.lane.b32.xlu0 %v539, 17
      %v644 = vpop.permute.xlu0 %643
      %645 = vrot.lane.b32.xlu0 %v545, 17
      %v646 = vpop.permute.xlu0 %645
      %647 = vrot.lane.b32.xlu0 %v551, 17
      %v648 = vpop.permute.xlu0 %647
      %649 = vrot.lane.b32.xlu0 %v552, 17
      %v650 = vpop.permute.xlu0 %649
      %651 = vrot.lane.b32.xlu0 %v557, 17
      %v652 = vpop.permute.xlu0 %651
      %653 = vrot.lane.b32.xlu0 %v563, 17
      %v654 = vpop.permute.xlu0 %653
      %655 = vrot.lane.b32.xlu0 %v564, 17
      %v656 = vpop.permute.xlu0 %655
      %657 = vrot.lane.b32.xlu0 %v569, 17
      %v658 = vpop.permute.xlu0 %657
      %659 = vrot.lane.b32.xlu0 %v575, 17
      %v660 = vpop.permute.xlu0 %659
      %661 = vrot.lane.b32.xlu0 %v576, 17
      %v662 = vpop.permute.xlu0 %661
      %663 = vrot.lane.b32.xlu0 %v581, 17
      %v664 = vpop.permute.xlu0 %663
      %665 = vrot.lane.b32.xlu0 %v587, 17
      %v666 = vpop.permute.xlu0 %665
      %667 = vrot.lane.b32.xlu0 %v588, 17
      %v668 = vpop.permute.xlu0 %667
      %v669 = vsel %vm493, %v616, %v618
      %v670 = vsel %vm493, %v618, %v620
      %v671 = vsel %vm493, %v622, %v624
      %v672 = vsel %vm493, %v624, %v626
      %v673 = vsel %vm493, %v628, %v630
      %v674 = vsel %vm493, %v630, %v632
      %v675 = vsel %vm493, %v634, %v636
      %v676 = vsel %vm493, %v636, %v638
      %v677 = vsel %vm493, %v640, %v642
      %v678 = vsel %vm493, %v642, %v644
      %v679 = vsel %vm493, %v646, %v648
      %v680 = vsel %vm493, %v648, %v650
      %v681 = vsel %vm493, %v652, %v654
      %v682 = vsel %vm493, %v654, %v656
      %v683 = vsel %vm493, %v658, %v660
      %v684 = vsel %vm493, %v660, %v662
      %v685 = vsel %vm493, %v664, %v666
      %v686 = vsel %vm493, %v666, %v668
      %v706 = vsel %vm307, %v610, 0
      %708 = vmatprep.subr.bf16.mxu0 %v670
      %709 = vmatpush1.bf16.msra.mxu0 %v669
      %710 = vmatprep.subr.bf16.mxu0 %v672
      %711 = vmatpush1.bf16.msra.mxu0 %v671
      %712 = vmatprep.subr.bf16.mxu0 %v674
      %713 = vmatpush1.bf16.msra.mxu0 %v673
      %714 = vmatprep.subr.bf16.mxu0 %v676
      %715 = vmatpush1.bf16.msra.mxu0 %v675
      %716 = vmatprep.subr.bf16.mxu0 %v678
      %717 = vmatpush1.bf16.msra.mxu0 %v677
      %718 = vmatprep.subr.bf16.mxu0 %v680
      %719 = vmatpush1.bf16.msra.mxu0 %v679
      %720 = vmatprep.subr.bf16.mxu0 %v682
      %721 = vmatpush1.bf16.msra.mxu0 %v681
      %722 = vmatprep.subr.bf16.mxu0 %v684
      %723 = vmatpush1.bf16.msra.mxu0 %v683
      %724 = vmatprep.subr.bf16.mxu0 %v686
      %725 = vmatpush1.bf16.msra.mxu0 %v685
      %726 = vmatprep.subr.bf16.mxu0 0
      %727 = vmatpush1.bf16.msra.mxu0 0
      %728 = vmatprep.subr.bf16.mxu0 0
      %729 = vmatpush1.bf16.msra.mxu0 0
      %730 = vmatprep.subr.bf16.mxu0 0
      %731 = vmatpush1.bf16.msra.mxu0 0
      %732 = vmatprep.subr.bf16.mxu0 0
      %733 = vmatpush1.bf16.msra.mxu0 0
      %734 = vmatprep.subr.bf16.mxu0 0
      %735 = vmatpush1.bf16.msra.mxu0 0
      %736 = vmatprep.subr.bf16.mxu0 0
      %737 = vmatpush1.bf16.msra.mxu0 0
      %738 = vmatprep.subr.bf16.mxu0 0
      %739 = vmatpush1.bf16.msra.mxu0 0
      %740 = vmatprep.mubr.bf16.mxu0 %v706
      %741 = vmatmul.mubr.bf16.gmra.mrb[0].mxu0 %v609
      %v742 = vpop.f32.mrb[0].mxu0
      %v743 = vadd.f32 %v596, %v742
      %v744 = vpop.f32.mrb[0].mxu0
      %v745 = vadd.f32 %v596, %v744
      %v746 = vpop.f32.mrb[0].mxu0
      %v747 = vadd.f32 %v601, %v746
      %v748 = vpop.f32.mrb[0].mxu0
      %v749 = vadd.f32 %v601, %v748
      %750 = vdwg.mxu0
      %v751 = vmax.f32 %v743, 0.0
      %v752 = vmax.f32 %v745, 0.0
      %v753 = vmax.f32 %v747, 0.0
      %v754 = vmax.f32 %v749, 0.0
      %v755 = vld [vmem:[%s5] sm:$0xf]
      %v756 = vld [vmem:[%s5 + $0x4] sm:$0xf]
      %v757 = vpack.c.bf16 %v753, %v751
      %v758 = vpack.c.bf16 %v754, %v752
      %v759 = vld [vmem:[%s6] sm:$0xff]
      %v760 = vld [vmem:[%s6 + $0x8] sm:$0xff]
      %762 = vset.pattern.permute.xlu0 0
      %763 = vperm.xlu0 %762, %v759
      %v764 = vpop.permute.xlu0 %763
      %767 = vset.pattern.permute.xlu0 0
      %768 = vperm.xlu0 %767, %v760
      %v769 = vpop.permute.xlu0 %768
      %v773 = vunpack.c.l.b16 %v755
      %v774 = vunpack.c.l.b16 %v756
      %v775 = vpack.c.b16 %v774, %v773
      %v777 = vsel %vm307, %v775, 0
      %779 = vmatprep.subr.bf16.mxu0 %v758
      %780 = vmatpush1.bf16.msra.mxu0 %v757
      %781 = vmatprep.subr.bf16.mxu0 0
      %782 = vmatpush1.bf16.msra.mxu0 0
      %783 = vmatprep.subr.bf16.mxu0 0
      %784 = vmatpush1.bf16.msra.mxu0 0
      %785 = vmatprep.subr.bf16.mxu0 0
      %786 = vmatpush1.bf16.msra.mxu0 0
      %787 = vmatprep.subr.bf16.mxu0 0
      %788 = vmatpush1.bf16.msra.mxu0 0
      %789 = vmatprep.subr.bf16.mxu0 0
      %790 = vmatpush1.bf16.msra.mxu0 0
      %791 = vmatprep.subr.bf16.mxu0 0
      %792 = vmatpush1.bf16.msra.mxu0 0
      %793 = vmatprep.subr.bf16.mxu0 0
      %794 = vmatpush1.bf16.msra.mxu0 0
      %795 = vmatprep.subr.bf16.mxu0 0
      %796 = vmatpush1.bf16.msra.mxu0 0
      %797 = vmatprep.subr.bf16.mxu0 0
      %798 = vmatpush1.bf16.msra.mxu0 0
      %799 = vmatprep.subr.bf16.mxu0 0
      %800 = vmatpush1.bf16.msra.mxu0 0
      %801 = vmatprep.subr.bf16.mxu0 0
      %802 = vmatpush1.bf16.msra.mxu0 0
      %803 = vmatprep.subr.bf16.mxu0 0
      %804 = vmatpush1.bf16.msra.mxu0 0
      %805 = vmatprep.subr.bf16.mxu0 0
      %806 = vmatpush1.bf16.msra.mxu0 0
      %807 = vmatprep.subr.bf16.mxu0 0
      %808 = vmatpush1.bf16.msra.mxu0 0
      %809 = vmatprep.subr.bf16.mxu0 0
      %810 = vmatpush1.bf16.msra.mxu0 0
      %811 = vmatprep.mubr.bf16.mxu0 0
      %812 = vmatmul.mubr.bf16.gmra.mrb[0].mxu0 %v777
      %v813 = vpop.f32.mrb[0].mxu0
      %v814 = vadd.f32 %v764, %v813
      %v815 = vpop.f32.mrb[0].mxu0
      %v816 = vadd.f32 %v764, %v815
      %v817 = vpop.f32.mrb[0].mxu0
      %v818 = vadd.f32 %v769, %v817
      %v819 = vpop.f32.mrb[0].mxu0
      %v820 = vadd.f32 %v769, %v819
      %821 = vdwg.mxu0
      %v822 = vmax.f32 %v814, 0.0
      %v823 = vmax.f32 %v816, 0.0
      %v824 = vmax.f32 %v818, 0.0
      %v825 = vmax.f32 %v820, 0.0
      %v826 = vld [vmem:[%s273] sm:$0xff]
      %v827 = vld [vmem:[%s273 + $0x8] sm:$0xff]
      %v828 = vld [vmem:[%s273 + $0x10] sm:$0xff]
      %v829 = vld [vmem:[%s273 + $0x18] sm:$0xff]
      %v830 = vadd.f32 %v826, %v822
      %v831 = vadd.f32 %v827, %v823
      %v832 = vadd.f32 %v828, %v824
      %v833 = vadd.f32 %v829, %v825
      %834 = vst [vmem:[%s278] sm:$0xff] %v830
      %835 = vst [vmem:[%s278 + $0x8] sm:$0xff] %v831
      %836 = vst [vmem:[%s278 + $0x10] sm:$0xff] %v832
      %837 = vst [vmem:[%s278 + $0x18] sm:$0xff] %v833
      %p838 = scmp.lt.s32.totalorder %s18, 1
      %s839 = scalar_select %p838, %s18, 1
      %s840 = smul.addr %s839, 4
      %s841 = smul.addr %s840, 8
      %s842 = scalar_lea.vmem %s7, %s841
      // Predicated region
      $region49: #{repres_forward.1} parent=47 // pred_check
        %p843 = pneg %p188
      $region50: #{repres_forward.1} parent=47 // pred_check_branch
        %845 = sbr.rel (%p843) target = $region52
      $region51: #{repres_forward.1} parent=47 // pred_region
        _
      $region52: #{repres_forward.1} parent=47 // pred_fallthru
        _
    $region48: #{repres_forward.1} parent=5 // pred_fallthru
      _
    %p846 = scmp.le.s32.totalorder 2, %s13
    // Predicated region
    $region53: #{repres_forward.1} parent=5 // pred_check
      %p847 = pneg %p846
    $region54: #{repres_forward.1} parent=5 // pred_check_branch
      %849 = sbr.rel (%p847) target = $region56
    $region55: #{repres_forward.1} parent=5 // pred_region
      %s850 = ssub.s32 %s13, 2
      // Predicated region
      $region57: #{repres_forward.1} parent=55 // pred_check
        %p851 = pneg %p194
      $region58: #{repres_forward.1} parent=55 // pred_check_branch
        %853 = sbr.rel (%p851) target = $region60
      $region59: #{repres_forward.1} parent=55 // pred_region
        %p854 = scmp.lt.s32.totalorder %s19, 1
        %s855 = scalar_select %p854, %s19, 1
        %s856 = smul.addr %s855, 4
        %s857 = smul.addr %s856, 8
        %s858 = scalar_lea.vmem %s7, %s857
      $region60: #{repres_forward.1} parent=55 // pred_fallthru
        _
    $region56: #{repres_forward.1} parent=5 // pred_fallthru
      _
  $region6: #{repres_forward.1} parent=0 // loop_footer
    %s17 = sadd.s32 1, %s13
  $region7: #{repres_forward.1} parent=0 // loop_footer_branch
    %12 = sbr.rel target = $region3
  $region8: #{repres_forward.1} parent=0 // loop_exit
    _

</llo_original>
